<compile_context>
chip_gen: v6e
topology: v6e:2x2x1
jax: 0.10.0
libtpu: 0.0.40
codegen_flags: <defaults>
</compile_context>

<pallas_src>
import functools
import math

import jax
import jax.numpy as jnp
from jax.experimental import pallas as pl
from jax.experimental.pallas import tpu as pltpu


# --------------------------------------------------------------------------- #
# Hardware detection / padding helpers
# --------------------------------------------------------------------------- #
def _round_up(n, m):
    return ((n + m - 1) // m) * m


@functools.lru_cache(maxsize=1)
def _hw():
    """Static per-process TPU-generation config (never raises)."""
    try:
        kind = jax.devices()[0].device_kind.lower()
    except Exception:
        kind = ""
    if "v7" in kind:
        return {"name": "v7x", "vmem_cap": 52 << 20, "bf16_eup": True,
                "two_cores": True, "mxu": 256}
    if "v6" in kind:
        return {"name": "v6e", "vmem_cap": 100 << 20, "bf16_eup": True,
                "two_cores": False, "mxu": 256}
    # v5e / older / unknown: conservative (no bf16 VPU/EUP, 128x128 MXU).
    return {"name": "v5e", "vmem_cap": 100 << 20, "bf16_eup": False,
            "two_cores": False, "mxu": 128}


def _pad_dim(d, mxu):
    """Lane-dense padding: 128 minimum, snap to full MXU width once d reaches it."""
    if mxu > 128 and d >= mxu:
        return _round_up(d, mxu)
    return _round_up(d, 128)


@functools.lru_cache(maxsize=1)
def _single_buffer_supported():
    """One-time AOT probe: does BlockSpec(pipeline_mode=pl.Buffered(1)) lower?

    Compiles a trivial kernel once (no execution of the real kernel, no silent
    fallback of real errors).  Only called when a tiled grid is actually used.
    """
    if not hasattr(pl, "Buffered"):
        return False

    def _k(x_ref, w_ref, o_ref):
        o_ref[...] = x_ref[...] + w_ref[...]

    try:
        fn = pl.pallas_call(
            _k,
            out_shape=jax.ShapeDtypeStruct((16, 128), jnp.float32),
            grid=(2,),
            in_specs=[
                pl.BlockSpec((8, 128), lambda i: (i, 0)),
                pl.BlockSpec((8, 128), lambda i: (0, 0),
                             pipeline_mode=pl.Buffered(1)),
            ],
            out_specs=pl.BlockSpec((8, 128), lambda i: (i, 0)),
        )
        jax.jit(fn).lower(
            jax.ShapeDtypeStruct((16, 128), jnp.float32),
            jax.ShapeDtypeStruct((8, 128), jnp.float32),
        ).compile()
        return True
    except Exception:
        return False


# --------------------------------------------------------------------------- #
# Kernels
# --------------------------------------------------------------------------- #
def _apply_activation(h, activation, bf16_act):
    """h: f32 [TB, H]. Returns bf16 (input dtype of the second MXU matmul)."""
    if activation == "tanh":
        if bf16_act:
            # v6e/v7x: bf16 tanh on the EUP (~2x rate); result is bf16 anyway.
            return jnp.tanh(h.astype(jnp.bfloat16))
        return jnp.tanh(h).astype(jnp.bfloat16)        # v5e: f32 EUP tanh
    return jnp.maximum(h, 0.0).astype(jnp.bfloat16)    # relu on the VPU


def _mlp_kernel(x_ref, w1_ref, b1_ref, w2_ref, b2_ref, o_ref, *,
                activation, bf16_act):
    """One (batch-tile of the) forward: (x @ W1 + b1) -> act -> (@ W2 + b2).

    x_ref : [TB, I]  bf16      w1_ref: [I, H] bf16     b1_ref: [1, H] f32
    w2_ref: [H, O]   bf16      b2_ref: [1, O] f32      o_ref : [TB, O] f32
    """
    h = jnp.dot(x_ref[...], w1_ref[...], preferred_element_type=jnp.float32)
    h = h + b1_ref[...]
    h = _apply_activation(h, activation, bf16_act)
    o = jnp.dot(h, w2_ref[...], preferred_element_type=jnp.float32)
    o_ref[...] = o + b2_ref[...]                       # lane-dense f32 store


def _mlp_htiled_kernel(x_ref, w1_ref, b1_ref, w2_ref, b2_ref, o_ref, acc_ref, *,
                       activation, bf16_act):
    """Hidden-axis-tiled variant (weights too large to keep VMEM-resident).

    Grid = (batch_tiles, hidden_tiles); hidden axis is a reduction into acc_ref.
    """
    h_idx = pl.program_id(1)

    @pl.when(h_idx == 0)
    def _():
        acc_ref[...] = jnp.zeros_like(acc_ref)

    h = jnp.dot(x_ref[...], w1_ref[...], preferred_element_type=jnp.float32)
    h = h + b1_ref[...]
    h = _apply_activation(h, activation, bf16_act)
    acc_ref[...] += jnp.dot(h, w2_ref[...], preferred_element_type=jnp.float32)

    @pl.when(h_idx == pl.num_programs(1) - 1)
    def _():
        o_ref[...] = acc_ref[...] + b2_ref[...]


# --------------------------------------------------------------------------- #
# Forward builder (cached per static config)
# --------------------------------------------------------------------------- #
def _choose_hidden_tile(H_p, I_p, O_p, tb, budget):
    for th in (4096, 2048, 1024, 512, 256, 128):
        if H_p % th:
            continue
        need = (2 * (2 * (I_p * th + th * O_p))   # double-buffered bf16 W1/W2 tiles
                + 2 * (2 * tb * I_p)              # double-buffered bf16 x tile
                + 2 * (4 * tb * O_p)              # double-buffered f32 out tile
                + 4 * tb * O_p                    # f32 acc scratch
                + (4 + 2) * tb * th)              # f32 + bf16 hidden intermediates
        if need <= budget:
            return th
    return 128


@functools.lru_cache(maxsize=None)
def _build_forward(B, I, H, O, activation):
    """Returns a jitted fn(x, w1_p, b1_p, w2_p, b2_p) -> [B, O] f32."""
    hw = _hw()
    mxu = hw["mxu"]
    I_p, H_p, O_p = _pad_dim(I, mxu), _pad_dim(H, mxu), _pad_dim(O, mxu)
    bf16_act = bool(hw["bf16_eup"]) and activation == "tanh"
    vmem_cap = hw["vmem_cap"]
    budget = int(0.8 * vmem_cap)

    # ---- batch tiling (multiples of 16: bf16 packs 2 rows per sublane) ------
    tile_default = 512 if vmem_cap > (72 << 20) else 256
    tb = min(tile_default, max(16, _round_up(B, 16)))
    if hw["two_cores"] and B > 16:
        # ensure >=2 grid steps so the "parallel" axis can use both TensorCores
        tb = min(tb, max(16, _round_up(-(-B // 2), 16)))
    tb = max(16, _round_up(tb, 16))
    B_p = _round_up(B, tb)
    n_tiles = B_p // tb

    # ---- scheduling hints ----------------------------------------------------
    flops = 2 * B_p * (I_p * H_p + H_p * O_p)
    transcendentals = B_p * H_p if activation == "tanh" else 0
    bytes_accessed = (2 * (B_p * I_p + I_p * H_p + H_p * O_p)
                      + 4 * (H_p + O_p) + 4 * B_p * O_p)
    cost = pl.CostEstimate(flops=flops, transcendentals=transcendentals,
                           bytes_accessed=bytes_accessed)

    kernel = functools.partial(_mlp_kernel, activation=activation,
                               bf16_act=bf16_act)

    weight_bytes = 2 * (I_p * H_p + H_p * O_p) + 4 * (H_p + O_p)
    gridless_need = (2 * B_p * I_p + weight_bytes
                     + 4 * B_p * O_p + (4 + 2) * B_p * H_p)

    if n_tiles == 1 and gridless_need <= budget:
        # ------ grid-less path: whole problem VMEM-resident, no pipeline -----
        vmem_limit = int(min(vmem_cap, max(32 << 20, 2 * gridless_need)))
        vspec = pl.BlockSpec(memory_space=pltpu.MemorySpace.VMEM)
        call = pl.pallas_call(
            kernel,
            out_shape=jax.ShapeDtypeStruct((B_p, O_p), jnp.float32),
            in_specs=[vspec] * 5,
            out_specs=vspec,
            compiler_params=pltpu.CompilerParams(vmem_limit_bytes=vmem_limit),
            cost_estimate=cost,
        )
    else:
        single_buf = _single_buffer_supported()
        w_bufs = 1 if single_buf else 2
        stream_bytes = 2 * (2 * tb * I_p) + 2 * (4 * tb * O_p)
        interm_bytes = (4 + 2) * tb * H_p
        resident_need = w_bufs * weight_bytes + stream_bytes + interm_bytes

        if resident_need <= budget:
            # ------ batch-tiled grid, weights VMEM-resident -------------------
            if single_buf:
                def wspec(shape):
                    return pl.BlockSpec(shape, lambda i: (0, 0),
                                        pipeline_mode=pl.Buffered(1))
            else:
                def wspec(shape):
                    return pl.BlockSpec(shape, lambda i: (0, 0))

            grid_spec = pltpu.PrefetchScalarGridSpec(
                num_scalar_prefetch=0,
                grid=(n_tiles,),
                in_specs=[
                    pl.BlockSpec((tb, I_p), lambda i: (i, 0)),   # x: batch-tiled
                    wspec((I_p, H_p)),                           # w1: resident
                    wspec((1, H_p)),                             # b1: resident
                    wspec((H_p, O_p)),                           # w2: resident
                    wspec((1, O_p)),                             # b2: resident
                ],
                out_specs=pl.BlockSpec((tb, O_p), lambda i: (i, 0)),
            )
            vmem_limit = int(min(vmem_cap, max(32 << 20, 2 * resident_need)))
            call = pl.pallas_call(
                kernel,
                out_shape=jax.ShapeDtypeStruct((B_p, O_p), jnp.float32),
                grid_spec=grid_spec,
                compiler_params=pltpu.CompilerParams(
                    dimension_semantics=("parallel",),
                    vmem_limit_bytes=vmem_limit),
                cost_estimate=cost,
            )
        else:
            # ------ hidden-axis-tiled fallback (e.g. big MLP on v7x 64 MiB) ---
            th = _choose_hidden_tile(H_p, I_p, O_p, tb, budget)
            hkernel = functools.partial(_mlp_htiled_kernel,
                                        activation=activation, bf16_act=bf16_act)
            grid_spec = pltpu.PrefetchScalarGridSpec(
                num_scalar_prefetch=0,
                grid=(n_tiles, H_p // th),
                in_specs=[
                    pl.BlockSpec((tb, I_p), lambda i, h: (i, 0)),
                    pl.BlockSpec((I_p, th), lambda i, h: (0, h)),
                    pl.BlockSpec((1, th),   lambda i, h: (0, h)),
                    pl.BlockSpec((th, O_p), lambda i, h: (h, 0)),
                    pl.BlockSpec((1, O_p),  lambda i, h: (0, 0)),
                ],
                out_specs=pl.BlockSpec((tb, O_p), lambda i, h: (i, 0)),
                scratch_shapes=[pltpu.VMEM((tb, O_p), jnp.float32)],
            )
            ht_need = (2 * (2 * (I_p * th + th * O_p))
                       + 2 * (2 * tb * I_p) + 2 * (4 * tb * O_p)
                       + 4 * tb * O_p + (4 + 2) * tb * th + 4 * (th + O_p))
            vmem_limit = int(min(vmem_cap, max(32 << 20, 2 * ht_need)))
            call = pl.pallas_call(
                hkernel,
                out_shape=jax.ShapeDtypeStruct((B_p, O_p), jnp.float32),
                grid_spec=grid_spec,
                compiler_params=pltpu.CompilerParams(
                    dimension_semantics=("parallel", "arbitrary"),
                    vmem_limit_bytes=vmem_limit),
                cost_estimate=cost,
            )

    def fwd(x, w1_p, b1_p, w2_p, b2_p):
        x = x.astype(jnp.float32)
        # Only x is padded/cast per call; weights are pre-padded constants.
        x_p = jnp.zeros((B_p, I_p), jnp.float32).at[:B, :I].set(x)
        x_p = x_p.astype(jnp.bfloat16)
        out_p = call(x_p, w1_p, b1_p, w2_p, b2_p)
        return out_p[:B, :O]

    return jax.jit(fwd)


# --------------------------------------------------------------------------- #
# Module wrapper (mirrors the PyTorch NeuralNetwork forward)
# --------------------------------------------------------------------------- #
class NeuralNetworkPallas:
    """Holds pre-padded bf16 weights; __call__ runs the fused Pallas forward."""

    def __init__(self, w1, b1, w2, b2, activation="tanh"):
        assert activation in ("tanh", "relu")
        self.activation = activation

        w1 = jnp.asarray(w1, jnp.float32)   # [I, H] (transposed nn.Linear weight)
        b1 = jnp.asarray(b1, jnp.float32)   # [H]
        w2 = jnp.asarray(w2, jnp.float32)   # [H, O]
        b2 = jnp.asarray(b2, jnp.float32)   # [O]

        I, H = w1.shape
        O = w2.shape[1]
        self.dims = (I, H, O)

        mxu = _hw()["mxu"]
        I_p, H_p, O_p = _pad_dim(I, mxu), _pad_dim(H, mxu), _pad_dim(O, mxu)

        # Pad + cast constant weights ONCE. Padded input columns contribute 0;
        # padded hidden units give act(0)=0 (tanh) or 0 (relu) and hit zero
        # rows of W2, so results match the un-padded forward.
        self.w1_p = (jnp.zeros((I_p, H_p), jnp.float32)
                     .at[:I, :H].set(w1).astype(jnp.bfloat16))
        self.b1_p = jnp.zeros((1, H_p), jnp.float32).at[0, :H].set(b1)
        self.w2_p = (jnp.zeros((H_p, O_p), jnp.float32)
                     .at[:H, :O].set(w2).astype(jnp.bfloat16))
        self.b2_p = jnp.zeros((1, O_p), jnp.float32).at[0, :O].set(b2)

    def __call__(self, x):
        x = jnp.asarray(x, jnp.float32)
        B = x.shape[0]
        fwd = _build_forward(B, *self.dims, self.activation)
        return fwd(x, self.w1_p, self.b1_p, self.w2_p, self.b2_p)


def init_params(key, input_size, hidden_size, output_size, activation):
    """Deterministic init matching the PyTorch module's scheme.

    hidden layer: xavier_uniform (tanh) or kaiming_uniform w/ relu gain;
    output layer: default nn.Linear init (uniform +/- 1/sqrt(fan_in)).
    Weights returned pre-transposed as [in, out].
    """
    k1, k2, k3, k4 = jax.random.split(key, 4)
    if activation == "tanh":
        bound1 = math.sqrt(6.0 / (input_size + hidden_size))   # xavier_uniform
    else:
        bound1 = math.sqrt(6.0 / input_size)                   # kaiming_uniform (relu)
    w1 = jax.random.uniform(k1, (input_size, hidden_size),
                            jnp.float32, -bound1, bound1)
    bb1 = 1.0 / math.sqrt(input_size)
    b1 = jax.random.uniform(k2, (hidden_size,), jnp.float32, -bb1, bb1)

    bound2 = 1.0 / math.sqrt(hidden_size)
    w2 = jax.random.uniform(k3, (hidden_size, output_size),
                            jnp.float32, -bound2, bound2)
    b2 = jax.random.uniform(k4, (output_size,), jnp.float32, -bound2, bound2)
    return w1, b1, w2, b2


if __name__ == "__main__":
    key = jax.random.PRNGKey(0)
    batch, input_size, hidden_size, output_size = 8, 32, 64, 16
    activation = "tanh"

    kx, kp = jax.random.split(key)
    x = jax.random.normal(kx, (batch, input_size), jnp.float32)
    w1, b1, w2, b2 = init_params(kp, input_size, hidden_size,
                                 output_size, activation)

    model = NeuralNetworkPallas(w1, b1, w2, b2, activation=activation)
    out = jax.block_until_ready(model(x))
    assert out.shape == (batch, output_size)

    # Reference 1: emulate the kernel's dtype flow (bf16 matmul inputs,
    # f32 accumulation, bf16 tanh on bf16-EUP generations).
    bf16_act = _hw()["bf16_eup"] and activation == "tanh"
    bf = lambda a: a.astype(jnp.bfloat16)
    h = jnp.dot(bf(x), bf(w1), preferred_element_type=jnp.float32) + b1
    if activation == "tanh":
        h = jnp.tanh(bf(h)) if bf16_act else bf(jnp.tanh(h))
    else:
        h = bf(jnp.maximum(h, 0.0))
    ref_bf16 = jnp.dot(h, bf(w2), preferred_element_type=jnp.float32) + b2
    assert jnp.allclose(out, ref_bf16, atol=2e-2, rtol=2e-2)

    # Reference 2: pure-f32 semantics of the PyTorch module (loose tolerance,
    # since the kernel multiplies in bf16 by design).
    hf = x @ w1 + b1
    hf = jnp.tanh(hf) if activation == "tanh" else jnp.maximum(hf, 0.0)
    ref_f32 = hf @ w2 + b2
    assert jnp.allclose(out, ref_f32, atol=5e-2, rtol=5e-2)

    # Also exercise the relu branch of the module.
    w1r, b1r, w2r, b2r = init_params(kp, input_size, hidden_size,
                                     output_size, "relu")
    model_r = NeuralNetworkPallas(w1r, b1r, w2r, b2r, activation="relu")
    out_r = jax.block_until_ready(model_r(x))
    ref_r = jnp.maximum(x @ w1r + b1r, 0.0) @ w2r + b2r
    assert out_r.shape == (batch, output_size)
    assert jnp.allclose(out_r, ref_r, atol=5e-2, rtol=5e-2)

    print("KERNEL_OK")
</pallas_src>

<mosaic_0001>
module attributes {stable_mosaic.version = 11 : i64} {
  func.func @_mlp_kernel(%arg0: memref<16x128xbf16, #tpu.memory_space<vmem>>, %arg1: memref<128x128xbf16, #tpu.memory_space<vmem>>, %arg2: memref<1x128xf32, #tpu.memory_space<vmem>>, %arg3: memref<128x128xbf16, #tpu.memory_space<vmem>>, %arg4: memref<1x128xf32, #tpu.memory_space<vmem>>, %arg5: memref<16x128xf32, #tpu.memory_space<vmem>>) attributes {dimension_semantics = [], scalar_prefetch = 0 : i64, scratch_operands = 0 : i64, tpu.core_type = #tpu.core_type<tc>} {
    %c0 = arith.constant 0 : index
    %c0_0 = arith.constant 0 : index
    %0 = vector.load %arg0[%c0, %c0_0] : memref<16x128xbf16, #tpu.memory_space<vmem>>, vector<16x128xbf16>
    %c0_1 = arith.constant 0 : index
    %c0_2 = arith.constant 0 : index
    %1 = vector.load %arg1[%c0_1, %c0_2] : memref<128x128xbf16, #tpu.memory_space<vmem>>, vector<128x128xbf16>
    %cst = arith.constant dense<0.000000e+00> : vector<16x128xf32>
    %2 = tpu.matmul %0, %1, %cst {dimension_numbers = #tpu.dot_dimension_numbers<[1], [0], [0], [1], [0, 0, 1, 1], [], []>} : vector<16x128xbf16>, vector<128x128xbf16>, vector<16x128xf32> -> vector<16x128xf32>
    %c0_3 = arith.constant 0 : index
    %c0_4 = arith.constant 0 : index
    %3 = vector.load %arg2[%c0_3, %c0_4] : memref<1x128xf32, #tpu.memory_space<vmem>>, vector<1x128xf32>
    %4 = vector.broadcast %3 : vector<1x128xf32> to vector<16x128xf32>
    %5 = arith.addf %2, %4 : vector<16x128xf32>
    %6 = math.tanh %5 : vector<16x128xf32>
    %7 = arith.truncf %6 : vector<16x128xf32> to vector<16x128xbf16>
    %c0_5 = arith.constant 0 : index
    %c0_6 = arith.constant 0 : index
    %8 = vector.load %arg3[%c0_5, %c0_6] : memref<128x128xbf16, #tpu.memory_space<vmem>>, vector<128x128xbf16>
    %cst_7 = arith.constant dense<0.000000e+00> : vector<16x128xf32>
    %9 = tpu.matmul %7, %8, %cst_7 {dimension_numbers = #tpu.dot_dimension_numbers<[1], [0], [0], [1], [0, 0, 1, 1], [], []>} : vector<16x128xbf16>, vector<128x128xbf16>, vector<16x128xf32> -> vector<16x128xf32>
    %c0_8 = arith.constant 0 : index
    %c0_9 = arith.constant 0 : index
    %10 = vector.load %arg4[%c0_8, %c0_9] : memref<1x128xf32, #tpu.memory_space<vmem>>, vector<1x128xf32>
    %11 = vector.broadcast %10 : vector<1x128xf32> to vector<16x128xf32>
    %12 = arith.addf %9, %11 : vector<16x128xf32>
    %c0_10 = arith.constant 0 : index
    %c0_11 = arith.constant 0 : index
    %13 = vector.load %arg5[%c0_10, %c0_11] : memref<16x128xf32, #tpu.memory_space<vmem>>, vector<16x128xf32>
    tpu.vector_store %arg5[%c0_10, %c0_11], %12 {strides = array<i32>} : memref<16x128xf32, #tpu.memory_space<vmem>>, vector<16x128xf32>,
    return
  }
}

</mosaic_0001>

<llo_original>
// kernel: fwd.1
$region0: #{fwd.1}
  #allocation0 [shape = 'u32[]', space=smem, size = 0x4, offset = 0x4, fixed_abs, tag = 'smem constant byte address 0x4 - core index']
  #allocation1 [shape = 'u32[144,128]{1,0:T(1,128)}', space=vmem, size = 0x12000, scoped, tag = 'internal scratch']
  %s0 = inlined_call_operand.vmem [shape: bf16[16,128], index: 0, kind: input, shape index: {}]
  %s1 = inlined_call_operand.hbm [shape: bf16[128,128], index: 1, kind: input, shape index: {}]
  %s2 = inlined_call_operand.vmem [shape: f32[1,128], index: 2, kind: input, shape index: {}]
  %s3 = inlined_call_operand.hbm [shape: bf16[128,128], index: 3, kind: input, shape index: {}]
  %s4 = inlined_call_operand.vmem [shape: f32[1,128], index: 4, kind: input, shape index: {}]
  %s5 = inlined_call_operand.vmem [shape: f32[16,128], index: 5, kind: output, shape index: {}]
  %s6 = sld [smem:[#allocation0]]
  $region38: #{fwd.1} parent=0
    _
  %s8 = ssub.s32 1, %s6
  %s9 = scalar_select 0, %s8, %s6
  $region1: #{fwd.1} parent=0
    #allocation2 [shape = 'u8[32768]{0}', space=vmem, size = 0x8000, scoped, tag = 'input window, operand 1, single buffered']
    #allocation3 [shape = 's32[1]{0}', space=sflag, size = 0x4, scoped, tag = 'scoped memory for fwd.1']
    #allocation4 [shape = 'u8[32768]{0}', space=vmem, size = 0x8000, scoped, tag = 'input window, operand 3, single buffered']
    #allocation5 [shape = 's32[1]{0}', space=sflag, size = 0x4, scoped, tag = 'scoped memory for fwd.1']
    %10 = vsyncpa [#allocation3], 0
    %11 = vsyncpa [#allocation5], 0
    // Predicated region
    $region2: #{fwd.1} parent=1 // pred_check
      _
    $region3: #{fwd.1} parent=1 // pred_check_branch
      %13 = sbr.rel (0) target = $region5
    $region4: #{fwd.1} parent=1 // pred_region
      _
    $region5: #{fwd.1} parent=1 // pred_fallthru
      _
    // Predicated region
    $region6: #{fwd.1} parent=1 // pred_check
      _
    $region7: #{fwd.1} parent=1 // pred_check_branch
      %15 = sbr.rel (0) target = $region9
    $region8: #{fwd.1} parent=1 // pred_region
      %s17 = ssub.s32 1024, 1024
      %18 = vsyncadd [#allocation3], %s17
      %s19 = sshll.u32 [#allocation2], 4
      %s20 = int_to_ptr.vmem [resolvable:$true] %s19
      %25 = dma.hbm_to_vmem [thread:$0]  %s1, 1024, %s20, [#allocation3], 64, 64, 4
    $region9: #{fwd.1} parent=1 // pred_fallthru
      _
    // Predicated region
    $region10: #{fwd.1} parent=1 // pred_check
      _
    $region11: #{fwd.1} parent=1 // pred_check_branch
      %27 = sbr.rel (0) target = $region13
    $region12: #{fwd.1} parent=1 // pred_region
      _
    $region13: #{fwd.1} parent=1 // pred_fallthru
      _
    // Predicated region
    $region14: #{fwd.1} parent=1 // pred_check
      _
    $region15: #{fwd.1} parent=1 // pred_check_branch
      %29 = sbr.rel (0) target = $region17
    $region16: #{fwd.1} parent=1 // pred_region
      %s31 = ssub.s32 1024, 1024
      %32 = vsyncadd [#allocation5], %s31
      %s33 = sshll.u32 [#allocation4], 4
      %s34 = int_to_ptr.vmem [resolvable:$true] %s33
      %39 = dma.hbm_to_vmem [thread:$0]  %s3, 1024, %s34, [#allocation5], 64, 64, 4
    $region17: #{fwd.1} parent=1 // pred_fallthru
      _
    // Predicated region
    $region18: #{fwd.1} parent=1 // pred_check
      _
    $region19: #{fwd.1} parent=1 // pred_check_branch
      %41 = sbr.rel (0) target = $region21
    $region20: #{fwd.1} parent=1 // pred_region
      _
    $region21: #{fwd.1} parent=1 // pred_fallthru
      _
    // Predicated region
    $region22: #{fwd.1} parent=1 // pred_check
      _
    $region23: #{fwd.1} parent=1 // pred_check_branch
      %43 = sbr.rel (0) target = $region25
    $region24: #{fwd.1} parent=1 // pred_region
      %44 = dma.done [#allocation3], 1024
    $region25: #{fwd.1} parent=1 // pred_fallthru
      _
    // Predicated region
    $region26: #{fwd.1} parent=1 // pred_check
      _
    $region27: #{fwd.1} parent=1 // pred_check_branch
      %46 = sbr.rel (0) target = $region29
    $region28: #{fwd.1} parent=1 // pred_region
      %47 = dma.done [#allocation5], 1024
    $region29: #{fwd.1} parent=1 // pred_fallthru
      _
    %v49 = vld [vmem:[%s0] sm:$0xf]
    %v50 = vld [vmem:[%s0 + $0x4] sm:$0xf]
    %v51 = vld [vmem:[#allocation2] sm:$0xf]
    %v52 = vld [vmem:[#allocation2 + $0x4] sm:$0xf]
    %v53 = vld [vmem:[#allocation2 + $0x8] sm:$0xf]
    %v54 = vld [vmem:[#allocation2 + $0xc] sm:$0xf]
    %v55 = vld [vmem:[#allocation2 + $0x10] sm:$0xf]
    %v56 = vld [vmem:[#allocation2 + $0x14] sm:$0xf]
    %v57 = vld [vmem:[#allocation2 + $0x18] sm:$0xf]
    %v58 = vld [vmem:[#allocation2 + $0x1c] sm:$0xf]
    %v59 = vld [vmem:[#allocation2 + $0x20] sm:$0xf]
    %v60 = vld [vmem:[#allocation2 + $0x24] sm:$0xf]
    %v61 = vld [vmem:[#allocation2 + $0x28] sm:$0xf]
    %v62 = vld [vmem:[#allocation2 + $0x2c] sm:$0xf]
    %v63 = vld [vmem:[#allocation2 + $0x30] sm:$0xf]
    %v64 = vld [vmem:[#allocation2 + $0x34] sm:$0xf]
    %v65 = vld [vmem:[#allocation2 + $0x38] sm:$0xf]
    %v66 = vld [vmem:[#allocation2 + $0x3c] sm:$0xf]
    %v67 = vld [vmem:[%s2] sm:$0x1]
    %v69 = vlaneseq
    %v70 = vshrl.u32 %v69, 7
    %v71 = vsub.s32 0, %v70
    %v72 = vrot.slane %v67, %v71
    %v76 = vunpack.c.l.b16 %v49
    %v77 = vunpack.c.l.b16 %v50
    %v78 = vpack.c.b16 %v77, %v76
    %v96 = vunpack.c.l.b16 %v51
    %v97 = vunpack.c.l.b16 %v52
    %v98 = vunpack.c.l.b16 %v53
    %v99 = vunpack.c.l.b16 %v54
    %v100 = vunpack.c.l.b16 %v55
    %v101 = vunpack.c.l.b16 %v56
    %v102 = vunpack.c.l.b16 %v57
    %v103 = vunpack.c.l.b16 %v58
    %v104 = vunpack.c.l.b16 %v59
    %v105 = vunpack.c.l.b16 %v60
    %v106 = vunpack.c.l.b16 %v61
    %v107 = vunpack.c.l.b16 %v62
    %v108 = vunpack.c.l.b16 %v63
    %v109 = vunpack.c.l.b16 %v64
    %v110 = vunpack.c.l.b16 %v65
    %v111 = vunpack.c.l.b16 %v66
    %v112 = vpack.c.b16 %v97, %v96
    %v113 = vpack.c.b16 %v99, %v98
    %v114 = vpack.c.b16 %v101, %v100
    %v115 = vpack.c.b16 %v103, %v102
    %v116 = vpack.c.b16 %v105, %v104
    %v117 = vpack.c.b16 %v107, %v106
    %v118 = vpack.c.b16 %v109, %v108
    %v119 = vpack.c.b16 %v111, %v110
    %128 = vmatprep.subr.bf16.mxu0 0
    %129 = vmatpush1.bf16.msra.mxu0 %v119
    %130 = vmatprep.subr.bf16.mxu0 0
    %131 = vmatpush1.bf16.msra.mxu0 %v118
    %132 = vmatprep.subr.bf16.mxu0 0
    %133 = vmatpush1.bf16.msra.mxu0 %v117
    %134 = vmatprep.subr.bf16.mxu0 0
    %135 = vmatpush1.bf16.msra.mxu0 %v116
    %136 = vmatprep.subr.bf16.mxu0 0
    %137 = vmatpush1.bf16.msra.mxu0 %v115
    %138 = vmatprep.subr.bf16.mxu0 0
    %139 = vmatpush1.bf16.msra.mxu0 %v114
    %140 = vmatprep.subr.bf16.mxu0 0
    %141 = vmatpush1.bf16.msra.mxu0 %v113
    %142 = vmatprep.subr.bf16.mxu0 0
    %143 = vmatpush1.bf16.msra.mxu0 %v112
    %144 = vmatprep.subr.bf16.mxu0 0
    %145 = vmatpush2.bf16.msra.mxu0 0
    %146 = vmatprep.subr.bf16.mxu0 0
    %147 = vmatpush2.bf16.msra.mxu0 0
    %148 = vmatprep.subr.bf16.mxu0 0
    %149 = vmatpush2.bf16.msra.mxu0 0
    %150 = vmatprep.subr.bf16.mxu0 0
    %151 = vmatpush2.bf16.msra.mxu0 0
    %152 = vmatprep.subr.bf16.mxu0 0
    %153 = vmatpush2.bf16.msra.mxu0 0
    %154 = vmatprep.subr.bf16.mxu0 0
    %155 = vmatpush2.bf16.msra.mxu0 0
    %156 = vmatprep.subr.bf16.mxu0 0
    %157 = vmatpush2.bf16.msra.mxu0 0
    %158 = vmatprep.subr.bf16.mxu0 0
    %159 = vmatpush2.bf16.msra.mxu0 0
    %160 = vmatprep.mubr.bf16.mxu0 0
    %161 = vmatmul.mubr.bf16.gmra.mxu0 %v78
    %v162 = vpop.f32.mrf.mxu0
    %v163 = vadd.f32 %v72, %v162
    %v164 = vpop.f32.mrf.mxu0
    %v165 = vpop.f32.mrf.mxu0
    %v166 = vadd.f32 %v72, %v165
    %v167 = vpop.f32.mrf.mxu0
    %168 = vdwg.mxu0
    %v169 = vtanh.pop %v163
    %v170 = vtanh.pop %v166
    %v171 = vpack.c.bf16 %v170, %v169
    %v172 = vld [vmem:[#allocation4] sm:$0xf]
    %v173 = vld [vmem:[#allocation4 + $0x4] sm:$0xf]
    %v174 = vld [vmem:[#allocation4 + $0x8] sm:$0xf]
    %v175 = vld [vmem:[#allocation4 + $0xc] sm:$0xf]
    %v176 = vld [vmem:[#allocation4 + $0x10] sm:$0xf]
    %v177 = vld [vmem:[#allocation4 + $0x14] sm:$0xf]
    %v178 = vld [vmem:[#allocation4 + $0x18] sm:$0xf]
    %v179 = vld [vmem:[#allocation4 + $0x1c] sm:$0xf]
    %v180 = vld [vmem:[#allocation4 + $0x20] sm:$0xf]
    %v181 = vld [vmem:[#allocation4 + $0x24] sm:$0xf]
    %v182 = vld [vmem:[#allocation4 + $0x28] sm:$0xf]
    %v183 = vld [vmem:[#allocation4 + $0x2c] sm:$0xf]
    %v184 = vld [vmem:[#allocation4 + $0x30] sm:$0xf]
    %v185 = vld [vmem:[#allocation4 + $0x34] sm:$0xf]
    %v186 = vld [vmem:[#allocation4 + $0x38] sm:$0xf]
    %v187 = vld [vmem:[#allocation4 + $0x3c] sm:$0xf]
    %v188 = vld [vmem:[%s4] sm:$0x1]
    %v190 = vlaneseq
    %v191 = vshrl.u32 %v190, 7
    %v192 = vsub.s32 0, %v191
    %v193 = vrot.slane %v188, %v192
    %v211 = vunpack.c.l.b16 %v172
    %v212 = vunpack.c.l.b16 %v173
    %v213 = vunpack.c.l.b16 %v174
    %v214 = vunpack.c.l.b16 %v175
    %v215 = vunpack.c.l.b16 %v176
    %v216 = vunpack.c.l.b16 %v177
    %v217 = vunpack.c.l.b16 %v178
    %v218 = vunpack.c.l.b16 %v179
    %v219 = vunpack.c.l.b16 %v180
    %v220 = vunpack.c.l.b16 %v181
    %v221 = vunpack.c.l.b16 %v182
    %v222 = vunpack.c.l.b16 %v183
    %v223 = vunpack.c.l.b16 %v184
    %v224 = vunpack.c.l.b16 %v185
    %v225 = vunpack.c.l.b16 %v186
    %v226 = vunpack.c.l.b16 %v187
    %v227 = vpack.c.b16 %v212, %v211
    %v228 = vpack.c.b16 %v214, %v213
    %v229 = vpack.c.b16 %v216, %v215
    %v230 = vpack.c.b16 %v218, %v217
    %v231 = vpack.c.b16 %v220, %v219
    %v232 = vpack.c.b16 %v222, %v221
    %v233 = vpack.c.b16 %v224, %v223
    %v234 = vpack.c.b16 %v226, %v225
    %243 = vmatprep.subr.bf16.mxu0 0
    %244 = vmatpush1.bf16.msra.mxu0 %v234
    %245 = vmatprep.subr.bf16.mxu0 0
    %246 = vmatpush1.bf16.msra.mxu0 %v233
    %247 = vmatprep.subr.bf16.mxu0 0
    %248 = vmatpush1.bf16.msra.mxu0 %v232
    %249 = vmatprep.subr.bf16.mxu0 0
    %250 = vmatpush1.bf16.msra.mxu0 %v231
    %251 = vmatprep.subr.bf16.mxu0 0
    %252 = vmatpush1.bf16.msra.mxu0 %v230
    %253 = vmatprep.subr.bf16.mxu0 0
    %254 = vmatpush1.bf16.msra.mxu0 %v229
    %255 = vmatprep.subr.bf16.mxu0 0
    %256 = vmatpush1.bf16.msra.mxu0 %v228
    %257 = vmatprep.subr.bf16.mxu0 0
    %258 = vmatpush1.bf16.msra.mxu0 %v227
    %259 = vmatprep.subr.bf16.mxu0 0
    %260 = vmatpush2.bf16.msra.mxu0 0
    %261 = vmatprep.subr.bf16.mxu0 0
    %262 = vmatpush2.bf16.msra.mxu0 0
    %263 = vmatprep.subr.bf16.mxu0 0
    %264 = vmatpush2.bf16.msra.mxu0 0
    %265 = vmatprep.subr.bf16.mxu0 0
    %266 = vmatpush2.bf16.msra.mxu0 0
    %267 = vmatprep.subr.bf16.mxu0 0
    %268 = vmatpush2.bf16.msra.mxu0 0
    %269 = vmatprep.subr.bf16.mxu0 0
    %270 = vmatpush2.bf16.msra.mxu0 0
    %271 = vmatprep.subr.bf16.mxu0 0
    %272 = vmatpush2.bf16.msra.mxu0 0
    %273 = vmatprep.subr.bf16.mxu0 0
    %274 = vmatpush2.bf16.msra.mxu0 0
    %275 = vmatprep.mubr.bf16.mxu0 0
    %276 = vmatmul.mubr.bf16.gmra.mxu0 %v171
    %v277 = vpop.f32.mrf.mxu0
    %v278 = vadd.f32 %v193, %v277
    %v279 = vpop.f32.mrf.mxu0
    %v280 = vpop.f32.mrf.mxu0
    %v281 = vadd.f32 %v193, %v280
    %v282 = vpop.f32.mrf.mxu0
    %283 = vdwg.mxu0
    %284 = vst [vmem:[%s5] sm:$0xff] %v278
    %285 = vst [vmem:[%s5 + $0x8] sm:$0xff] %v281
    // Predicated region
    $region30: #{fwd.1} parent=1 // pred_check
      _
    $region31: #{fwd.1} parent=1 // pred_check_branch
      %287 = sbr.rel (0) target = $region33
    $region32: #{fwd.1} parent=1 // pred_region
      _
    $region33: #{fwd.1} parent=1 // pred_fallthru
      _
    // Predicated region
    $region34: #{fwd.1} parent=1 // pred_check
      _
    $region35: #{fwd.1} parent=1 // pred_check_branch
      %289 = sbr.rel (0) target = $region37
    $region36: #{fwd.1} parent=1 // pred_region
      _
    $region37: #{fwd.1} parent=1 // pred_fallthru
      _
    %290 = vsyncpa [#allocation3], 1
    %291 = vsyncpa [#allocation5], 1

</llo_original>
